<compile_context>
chip_gen: v7x
topology: tpu7x:2x2x1
jax: 0.10.0
libtpu: 0.0.40
codegen_flags: <defaults>
</compile_context>

<pallas_src>
import functools
import math

import jax
import jax.numpy as jnp
from jax.experimental import pallas as pl
from jax.experimental.pallas import tpu as pltpu


# ----------------------------------------------------------------------------
# Kernel 1: row-tiled dense (1x1 conv as matmul) with optional ReLU
# ----------------------------------------------------------------------------

def _dense_kernel(x_ref, w_ref, b_ref, o_ref, *, relu):
    acc = jnp.dot(x_ref[...], w_ref[...], preferred_element_type=jnp.float32)
    acc = acc + b_ref[...]
    if relu:
        acc = jnp.maximum(acc, 0.0)
    o_ref[...] = acc.astype(o_ref.dtype)


def _pick_tile_m(M, cap=1024):
    """Largest divisor of M that is a multiple of 8 and <= cap, preferring >=2
    grid steps so v7x's two TensorCores both get work.  Returns None if no such
    divisor exists (pad fallback)."""
    upper = min(cap, M // 2 if M >= 16 else M)
    for t in range(max(upper, 8), 7, -1):
        if M % t == 0 and t % 8 == 0:
            return t
    return None


def dense_pallas(x2d, w, b, *, relu=False):
    """y = x2d @ w + b (optional ReLU), tiled over rows on the MXU."""
    M, Cin = x2d.shape
    Cout = w.shape[1]
    tile_m = _pick_tile_m(M)
    padded = False
    if tile_m is None:
        # TODO(synk): pad fallback only for awkward M; main call sites avoid it.
        tile_m = 128
        Mp = int(pl.cdiv(M, tile_m)) * tile_m
        x2d = jnp.pad(x2d, ((0, Mp - M), (0, 0)))
        padded = True
    else:
        Mp = M
    out = pl.pallas_call(
        functools.partial(_dense_kernel, relu=relu),
        out_shape=jax.ShapeDtypeStruct((Mp, Cout), x2d.dtype),
        grid=(Mp // tile_m,),
        in_specs=[
            pl.BlockSpec((tile_m, Cin), lambda i: (i, 0)),
            pl.BlockSpec((Cin, Cout), lambda i: (0, 0)),
            pl.BlockSpec((1, Cout), lambda i: (0, 0)),
        ],
        out_specs=pl.BlockSpec((tile_m, Cout), lambda i: (i, 0)),
        compiler_params=pltpu.CompilerParams(
            dimension_semantics=("parallel",)),
    )(x2d, w, b.reshape(1, Cout))
    return out[:M] if padded else out


# ----------------------------------------------------------------------------
# Kernel 2: fused integrator + detector (everything after ROI pooling)
#   per grid step b:
#     dw-xcorr (th*tw taps, VPU FMAs)
#       -> fuse 1x1 conv + ReLU           (MXU, K=C)
#       -> zero-padded VMEM scratch
#       -> both 3x3 towers + ReLU         (9 accumulating matmuls, N=2C)
#       -> both heads (block-diag weight) (one matmul, output slab of 8 ch)
# ----------------------------------------------------------------------------

def _fused_postroi_kernel(sw_ref, tp_ref, fw_ref, fb_ref, tw_ref, tb_ref,
                          hw_ref, hb_ref, out_ref, pad_ref,
                          *, gh, gw, th, tw_k, C):
    # 1) depth-wise cross-correlation, 'same' output
    acc = jnp.zeros((gh, gw, C), jnp.float32)
    for i in range(th):
        for j in range(tw_k):
            sv = sw_ref[0, i:i + gh, j:j + gw, :].astype(jnp.float32)
            tv = tp_ref[0, i, j:j + 1, :].astype(jnp.float32)        # (1, C)
            acc = acc + sv * tv

    # 2) fuse 1x1 conv + ReLU
    fused = jnp.dot(acc.reshape(gh * gw, C), fw_ref[...],
                    preferred_element_type=jnp.float32) + fb_ref[...]
    fused = jnp.maximum(fused, 0.0)

    # 3) zero-pad the fused map in VMEM scratch for the 3x3 towers
    pad_ref[...] = jnp.zeros_like(pad_ref)
    pad_ref[1:1 + gh, 1:1 + gw, :] = fused.reshape(gh, gw, C)

    # 4) both 3x3 towers at once: in-kernel im2col as 9 accumulating matmuls
    acc_t = jnp.zeros((gh * gw, 2 * C), jnp.float32)
    for dy in range(3):
        for dx in range(3):
            patch = pad_ref[dy:dy + gh, dx:dx + gw, :].reshape(gh * gw, C)
            acc_t = acc_t + jnp.dot(patch, tw_ref[dy * 3 + dx],
                                    preferred_element_type=jnp.float32)
    towers = jnp.maximum(acc_t + tb_ref[...], 0.0)                   # (gh*gw, 2C)

    # 5) both heads via one block-diagonal matmul -> combined 8-channel slab
    heads = jnp.dot(towers, hw_ref[...],
                    preferred_element_type=jnp.float32) + hb_ref[...]
    out_ref[0] = heads.reshape(gh, gw, 8).astype(out_ref.dtype)


def fused_postroi(subsearch, templates, fuse_w, fuse_b,
                  tower_w, tower_b, head_w, head_b):
    B, gh, gw, C = subsearch.shape
    _, th, tw_k, _ = templates.shape
    pt, pb = (th - 1) // 2, (th - 1) - (th - 1) // 2
    pL, pR = (tw_k - 1) // 2, (tw_k - 1) - (tw_k - 1) // 2
    sw_pad = jnp.pad(subsearch, ((0, 0), (pt, pb), (pL, pR), (0, 0)))
    Hp, Wp = gh + th - 1, gw + tw_k - 1
    return pl.pallas_call(
        functools.partial(_fused_postroi_kernel,
                          gh=gh, gw=gw, th=th, tw_k=tw_k, C=C),
        out_shape=jax.ShapeDtypeStruct((B, gh, gw, 8), subsearch.dtype),
        grid=(B,),
        in_specs=[
            pl.BlockSpec((1, Hp, Wp, C), lambda b: (b, 0, 0, 0)),
            pl.BlockSpec((1, th, tw_k, C), lambda b: (b, 0, 0, 0)),
            pl.BlockSpec((C, C), lambda b: (0, 0)),
            pl.BlockSpec((1, C), lambda b: (0, 0)),
            pl.BlockSpec((9, C, 2 * C), lambda b: (0, 0, 0)),
            pl.BlockSpec((1, 2 * C), lambda b: (0, 0)),
            pl.BlockSpec((2 * C, 8), lambda b: (0, 0)),
            pl.BlockSpec((1, 8), lambda b: (0, 0)),
        ],
        out_specs=pl.BlockSpec((1, gh, gw, 8), lambda b: (b, 0, 0, 0)),
        scratch_shapes=[pltpu.VMEM((gh + 2, gw + 2, C), jnp.float32)],
        compiler_params=pltpu.CompilerParams(
            dimension_semantics=("parallel",)),
    )(sw_pad, templates, fuse_w, fuse_b.reshape(1, C),
      tower_w, tower_b.reshape(1, 2 * C), head_w, head_b.reshape(1, 8))


# ----------------------------------------------------------------------------
# Plain-JAX glue: PrROIPool approximation (1-sample-per-bin ROI-align average)
# ----------------------------------------------------------------------------
# TODO(synk): exact PrROIPool computes an analytic bilinear integral over each
# bin; here each bin is approximated by a single bilinear sample at its center
# (data-dependent gather, kept outside Pallas).

def roi_align_avg(feat_nhwc, rois_xywh, out_h, out_w, spatial_scale):
    B, H, W, C = feat_nhwc.shape
    x0r = rois_xywh[:, 0] * spatial_scale
    y0r = rois_xywh[:, 1] * spatial_scale
    rw = jnp.maximum(rois_xywh[:, 2] * spatial_scale, 1e-3)
    rh = jnp.maximum(rois_xywh[:, 3] * spatial_scale, 1e-3)
    gy = (jnp.arange(out_h, dtype=jnp.float32) + 0.5) / out_h
    gx = (jnp.arange(out_w, dtype=jnp.float32) + 0.5) / out_w
    ys = y0r[:, None] + gy[None, :] * rh[:, None]      # [B, out_h]
    xs = x0r[:, None] + gx[None, :] * rw[:, None]      # [B, out_w]

    def sample_one(feat, ys_b, xs_b):
        y = jnp.clip(ys_b, 0.0, H - 1.0)
        x = jnp.clip(xs_b, 0.0, W - 1.0)
        y0 = jnp.floor(y).astype(jnp.int32)
        x0 = jnp.floor(x).astype(jnp.int32)
        y1 = jnp.minimum(y0 + 1, H - 1)
        x1 = jnp.minimum(x0 + 1, W - 1)
        wy = (y - y0.astype(jnp.float32))[:, None, None]
        wx = (x - x0.astype(jnp.float32))[None, :, None]
        f00 = feat[y0][:, x0]
        f01 = feat[y0][:, x1]
        f10 = feat[y1][:, x0]
        f11 = feat[y1][:, x1]
        return (f00 * (1 - wy) * (1 - wx) + f01 * (1 - wy) * wx +
                f10 * wy * (1 - wx) + f11 * wy * wx)

    return jax.vmap(sample_one)(feat_nhwc, ys, xs)


# ----------------------------------------------------------------------------
# Parameters & combined-weight preparation
# ----------------------------------------------------------------------------

def init_params(key, cin, c):
    ks = jax.random.split(key, 6)

    def w(k, shape, fan_in):
        return jax.random.normal(k, shape, jnp.float32) / math.sqrt(fan_in)

    return {
        "neck_w": w(ks[0], (cin, c), cin), "neck_b": jnp.zeros((c,), jnp.float32),
        "fuse_w": w(ks[1], (c, c), c), "fuse_b": jnp.zeros((c,), jnp.float32),
        "bb_tower_w": w(ks[2], (3, 3, c, c), 9 * c), "bb_tower_b": jnp.zeros((c,), jnp.float32),
        "bb_head_w": w(ks[3], (c, 4), c), "bb_head_b": jnp.zeros((4,), jnp.float32),
        "cls_tower_w": w(ks[4], (3, 3, c, c), 9 * c), "cls_tower_b": jnp.zeros((c,), jnp.float32),
        "cls_head_w": w(ks[5], (c, 2), c), "cls_head_b": jnp.zeros((2,), jnp.float32),
    }


def _combine_detector_weights(params, C):
    # bb/cls towers concatenated on output channels: (3,3,C,2C) -> (9, C, 2C)
    tower_w = jnp.concatenate([params["bb_tower_w"], params["cls_tower_w"]],
                              axis=-1).reshape(9, C, 2 * C)
    tower_b = jnp.concatenate([params["bb_tower_b"], params["cls_tower_b"]], axis=0)
    # block-diagonal head: first C rows -> bbox (4ch), last C rows -> cls (2ch), 2ch pad
    head_w = jnp.zeros((2 * C, 8), jnp.float32)
    head_w = head_w.at[:C, 0:4].set(params["bb_head_w"])
    head_w = head_w.at[C:, 4:6].set(params["cls_head_w"])
    head_b = jnp.zeros((8,), jnp.float32)
    head_b = head_b.at[0:4].set(params["bb_head_b"]).at[4:6].set(params["cls_head_b"])
    return tower_w, tower_b, head_w, head_b


# ----------------------------------------------------------------------------
# Estimator forward (offline-training path)
# ----------------------------------------------------------------------------

def estimator_forward(params, train_feats, test_feats, train_boxes, test_win,
                      test_bb_inwin=None, online_response=None,
                      graph_size=(8, 8), tmpl_size=(4, 4), t_stride=4):
    """train_feats: [num_images, num_sequences, Cin, H, W]   (NCHW frames)
       test_feats : [num_test_images*num_sequences, Cin, H, W]
       train_boxes: [num_images, num_sequences, 4]  (x, y, w, h, image coords)
       test_win   : [num_test_images*num_sequences, 4]
    """
    assert train_boxes.ndim == 3
    num_images, num_sequences = train_boxes.shape[:2]
    del test_bb_inwin, online_response, num_images  # unused in forward outputs

    train_feat0 = train_feats[0]            # [S, Cin, H, W]
    train_box0 = train_boxes[0]             # [S, 4]

    # NCHW -> NHWC
    tf0 = jnp.transpose(train_feat0, (0, 2, 3, 1))
    tsf = jnp.transpose(test_feats, (0, 2, 3, 1))
    S, H, W, Cin = tf0.shape
    B = tsf.shape[0]
    C = params["neck_w"].shape[1]

    # --- neck (AdjustLayer): one batched 1x1-conv matmul over train + test rows
    rows = jnp.concatenate([tf0.reshape(S * H * W, Cin),
                            tsf.reshape(B * H * W, Cin)], axis=0)
    adj = dense_pallas(rows, params["neck_w"], params["neck_b"], relu=True)
    tf0a = adj[:S * H * W].reshape(S, H, W, C)
    tsfa = adj[S * H * W:].reshape(B, H, W, C)

    templates = roi_align_avg(tf0a, train_box0, tmpl_size[0], tmpl_size[1],
                              1.0 / t_stride)                 # [S, th, tw, C]
    subsearch_windows = roi_align_avg(tsfa, test_win, graph_size[0],
                                      graph_size[1], 1.0 / t_stride)  # [B, gh, gw, C]

    # tile the per-sequence templates over the test frames
    # (assumes test frames are ordered image-major, sequence varying fastest)
    templates_t = jnp.tile(templates, (B // num_sequences, 1, 1, 1))

    # --- integrator + detector fused in a single Pallas kernel ---------------
    tower_w, tower_b, head_w, head_b = _combine_detector_weights(params, C)
    heads = fused_postroi(subsearch_windows, templates_t,
                          params["fuse_w"], params["fuse_b"],
                          tower_w, tower_b, head_w, head_b)   # [B, gh, gw, 8]

    bbox_offsets = heads[..., 0:4]
    output_cls = heads[..., 4:6]

    # back to PyTorch NCHW convention
    return (jnp.transpose(bbox_offsets, (0, 3, 1, 2)),
            jnp.transpose(output_cls, (0, 3, 1, 2)))


# ----------------------------------------------------------------------------

if __name__ == "__main__":
    key = jax.random.PRNGKey(0)
    k_tr, k_te, k_b0, k_bw, k_p = jax.random.split(key, 5)

    num_images, num_sequences, num_test_images = 2, 2, 2
    Cin, C, H, W = 8, 16, 16, 16
    t_stride = 4                          # image size = H * t_stride = 64
    graph_size, tmpl_size = (8, 8), (4, 4)
    B_test = num_test_images * num_sequences

    train_feats = jax.random.normal(k_tr, (num_images, num_sequences, Cin, H, W), jnp.float32)
    test_feats = jax.random.normal(k_te, (B_test, Cin, H, W), jnp.float32)

    def rand_boxes(k, shape):
        kx, ky, kw_, kh_ = jax.random.split(k, 4)
        x = jax.random.uniform(kx, shape, minval=4.0, maxval=28.0)
        y = jax.random.uniform(ky, shape, minval=4.0, maxval=28.0)
        w_ = jax.random.uniform(kw_, shape, minval=12.0, maxval=28.0)
        h_ = jax.random.uniform(kh_, shape, minval=12.0, maxval=28.0)
        return jnp.stack([x, y, w_, h_], axis=-1)

    train_boxes = rand_boxes(k_b0, (num_images, num_sequences))   # [2, 2, 4]
    test_win = rand_boxes(k_bw, (B_test,))                        # [4, 4]

    params = init_params(k_p, Cin, C)

    bbox_offsets, output_cls = estimator_forward(
        params, train_feats, test_feats, train_boxes, test_win,
        graph_size=graph_size, tmpl_size=tmpl_size, t_stride=t_stride)

    jax.block_until_ready((bbox_offsets, output_cls))
    assert bbox_offsets.shape == (B_test, 4, graph_size[0], graph_size[1])
    assert output_cls.shape == (B_test, 2, graph_size[0], graph_size[1])
    print("KERNEL_OK")
</pallas_src>

<mosaic_0001>
module attributes {stable_mosaic.version = 11 : i64} {
  func.func @_dense_kernel(%arg0: i32, %arg1: memref<768x8xf32, #tpu.memory_space<vmem>>, %arg2: memref<8x16xf32, #tpu.memory_space<vmem>>, %arg3: memref<1x16xf32, #tpu.memory_space<vmem>>, %arg4: memref<768x16xf32, #tpu.memory_space<vmem>>) attributes {dimension_semantics = [#tpu.dimension_semantics<parallel>], iteration_bounds = array<i64: 2>, scalar_prefetch = 0 : i64, scratch_operands = 0 : i64, tpu.core_type = #tpu.core_type<tc>, window_params = [{transform_indices = @transform_0, window_bounds = array<i64: 768, 8>}, {pipeline_mode = #tpu.pipeline_mode<synchronous>, transform_indices = @transform_1, window_bounds = array<i64: 8, 16>}, {pipeline_mode = #tpu.pipeline_mode<synchronous>, transform_indices = @transform_2, window_bounds = array<i64: 1, 16>}, {transform_indices = @transform_3, window_bounds = array<i64: 768, 16>}]} {
    %c0 = arith.constant 0 : index
    %c0_0 = arith.constant 0 : index
    %0 = vector.load %arg1[%c0, %c0_0] : memref<768x8xf32, #tpu.memory_space<vmem>>, vector<768x8xf32>
    %c0_1 = arith.constant 0 : index
    %c0_2 = arith.constant 0 : index
    %1 = vector.load %arg2[%c0_1, %c0_2] : memref<8x16xf32, #tpu.memory_space<vmem>>, vector<8x16xf32>
    %cst = arith.constant dense<0.000000e+00> : vector<768x16xf32>
    %2 = tpu.matmul %0, %1, %cst {dimension_numbers = #tpu.dot_dimension_numbers<[1], [0], [0], [1], [0, 0, 1, 1], [], []>} : vector<768x8xf32>, vector<8x16xf32>, vector<768x16xf32> -> vector<768x16xf32>
    %c0_3 = arith.constant 0 : index
    %c0_4 = arith.constant 0 : index
    %3 = vector.load %arg3[%c0_3, %c0_4] : memref<1x16xf32, #tpu.memory_space<vmem>>, vector<1x16xf32>
    %4 = vector.broadcast %3 : vector<1x16xf32> to vector<768x16xf32>
    %5 = arith.addf %2, %4 : vector<768x16xf32>
    %cst_5 = arith.constant 0.000000e+00 : f32
    %6 = vector.broadcast %cst_5 : f32 to vector<768x16xf32>
    %7 = arith.maximumf %5, %6 : vector<768x16xf32>
    %c0_6 = arith.constant 0 : index
    %c0_7 = arith.constant 0 : index
    %8 = vector.load %arg4[%c0_6, %c0_7] : memref<768x16xf32, #tpu.memory_space<vmem>>, vector<768x16xf32>
    tpu.vector_store %arg4[%c0_6, %c0_7], %7 {strides = array<i32>} : memref<768x16xf32, #tpu.memory_space<vmem>>, vector<768x16xf32>,
    return
  }
  func.func @transform_0(%arg0: i32) -> (i32, i32) {
    %c0_i32 = arith.constant 0 : i32
    %c0_i32_0 = arith.constant 0 : i32
    return %arg0, %c0_i32 : i32, i32
  }
  func.func @transform_1(%arg0: i32) -> (i32, i32) {
    %c0_i32 = arith.constant 0 : i32
    %c0_i32_0 = arith.constant 0 : i32
    %c0_i32_1 = arith.constant 0 : i32
    return %c0_i32, %c0_i32_0 : i32, i32
  }
  func.func @transform_2(%arg0: i32) -> (i32, i32) {
    %c0_i32 = arith.constant 0 : i32
    %c0_i32_0 = arith.constant 0 : i32
    %c0_i32_1 = arith.constant 0 : i32
    return %c0_i32, %c0_i32_0 : i32, i32
  }
  func.func @transform_3(%arg0: i32) -> (i32, i32) {
    %c0_i32 = arith.constant 0 : i32
    %c0_i32_0 = arith.constant 0 : i32
    return %arg0, %c0_i32 : i32, i32
  }
}

</mosaic_0001>

<llo_original>
// kernel: tpu_custom_call.1
$region0: #{tpu_custom_call.1}
  #allocation0 [shape = 'u32[]', space=smem, size = 0x4, offset = 0x4, fixed_abs, tag = 'smem constant byte address 0x4 - core index']
  #allocation1 [shape = 'u32[144,128]{1,0:T(1,128)}', space=vmem, size = 0x12000, scoped, tag = 'internal scratch']
  %s0 = inlined_call_operand.vmem [shape: f32[1536,8], index: 0, kind: input, shape index: {}]
  %s1 = inlined_call_operand.vmem [shape: f32[8,16], index: 1, kind: input, shape index: {}]
  %s2 = inlined_call_operand.vmem [shape: f32[1,16], index: 2, kind: input, shape index: {}]
  %s3 = inlined_call_operand.vmem [shape: f32[1536,16], index: 3, kind: output, shape index: {}]
  %s4 = sld [smem:[#allocation0]]
  $region45: #{tpu_custom_call.1} parent=0
    _
  %s6 = ssub.s32 1, %s4
  %s7 = scalar_select 0, %s6, %s4
  loop: start=0, step=1, limit=4
  $region2: #{tpu_custom_call.1} parent=0 // loop_pre_header
    _
  $region3: #{tpu_custom_call.1} parent=0 // loop_header
    %s9 = sphi 0, %s13
    %p10 = scmp.ge.s32.totalorder %s9, 4
    %s19 = sphi 0, %s21
    %s22 = sphi 0, %s19
    %s23 = sphi 0, %s22
    %s39 = sphi 0, %s23
    %s43 = sphi 0, %s43
    %s45 = sphi 0, %s43
    %s46 = sphi 0, %s45
    %s60 = sphi 0, %s46
    %s64 = sphi 0, %s64
    %s66 = sphi 0, %s64
    %s67 = sphi 0, %s66
    %s81 = sphi 0, %s67
    %s87 = sphi 0, %s89
    %s90 = sphi 0, %s87
    %s91 = sphi 0, %s90
    %s107 = sphi 0, %s91
  $region4: #{tpu_custom_call.1} parent=0 // loop_header_branch
    %12 = sbr.rel (%p10) target = $region8
  $region5: #{tpu_custom_call.1} parent=0 // loop_body
    %s14 = ssub.s32 %s9, 1
    %s15 = ssub.s32 %s9, 2
    %s16 = sadd.s32 %s9, 1
    %s17 = ssub.s32 %s9, %s16
    %p18 = scmp.eq.s32.totalorder %s17, 0
    %s20 = sadd.s32 %s19, 1
    %s21 = scalar_select %p18, %s19, %s20
    %p24 = pneg %p18
    %p25 = scmp.eq.s32.totalorder %s9, 1
    %p26 = por %p24, %p25
    %p27 = scmp.ne.s32.totalorder %s19, %s22
    %p28 = scmp.eq.s32.totalorder %s9, 0
    %p29 = por %p27, %p28
    %p30 = scmp.ne.s32.totalorder %s19, %s22
    %p31 = scmp.eq.s32.totalorder %s14, 1
    %p32 = por %p30, %p31
    %p33 = scmp.ne.s32.totalorder %s22, %s23
    %p34 = scmp.eq.s32.totalorder %s14, 0
    %p35 = por %p33, %p34
    %p36 = scmp.ne.s32.totalorder %s22, %s23
    %p37 = scmp.eq.s32.totalorder %s15, 1
    %p38 = por %p36, %p37
    %p40 = scmp.ne.s32.totalorder %s23, %s39
    %p41 = scmp.eq.s32.totalorder %s15, 0
    %p42 = por %p40, %p41
    %s44 = sadd.s32 %s43, 1
    %p47 = scmp.eq.s32.totalorder %s9, 1
    %p48 = scmp.ne.s32.totalorder %s43, %s45
    %p49 = scmp.eq.s32.totalorder %s9, 0
    %p50 = por %p48, %p49
    %p51 = scmp.ne.s32.totalorder %s43, %s45
    %p52 = scmp.eq.s32.totalorder %s14, 1
    %p53 = por %p51, %p52
    %p54 = scmp.ne.s32.totalorder %s45, %s46
    %p55 = scmp.eq.s32.totalorder %s14, 0
    %p56 = por %p54, %p55
    %p57 = scmp.ne.s32.totalorder %s45, %s46
    %p58 = scmp.eq.s32.totalorder %s15, 1
    %p59 = por %p57, %p58
    %p61 = scmp.ne.s32.totalorder %s46, %s60
    %p62 = scmp.eq.s32.totalorder %s15, 0
    %p63 = por %p61, %p62
    %s65 = sadd.s32 %s64, 1
    %p68 = scmp.eq.s32.totalorder %s9, 1
    %p69 = scmp.ne.s32.totalorder %s64, %s66
    %p70 = scmp.eq.s32.totalorder %s9, 0
    %p71 = por %p69, %p70
    %p72 = scmp.ne.s32.totalorder %s64, %s66
    %p73 = scmp.eq.s32.totalorder %s14, 1
    %p74 = por %p72, %p73
    %p75 = scmp.ne.s32.totalorder %s66, %s67
    %p76 = scmp.eq.s32.totalorder %s14, 0
    %p77 = por %p75, %p76
    %p78 = scmp.ne.s32.totalorder %s66, %s67
    %p79 = scmp.eq.s32.totalorder %s15, 1
    %p80 = por %p78, %p79
    %p82 = scmp.ne.s32.totalorder %s67, %s81
    %p83 = scmp.eq.s32.totalorder %s15, 0
    %p84 = por %p82, %p83
    %s85 = ssub.s32 %s9, %s16
    %p86 = scmp.eq.s32.totalorder %s85, 0
    %s88 = sadd.s32 %s87, 1
    %s89 = scalar_select %p86, %s87, %s88
    %p92 = pneg %p86
    %p93 = scmp.eq.s32.totalorder %s9, 1
    %p94 = por %p92, %p93
    %p95 = scmp.ne.s32.totalorder %s87, %s90
    %p96 = scmp.eq.s32.totalorder %s9, 0
    %p97 = por %p95, %p96
    %p98 = scmp.ne.s32.totalorder %s87, %s90
    %p99 = scmp.eq.s32.totalorder %s14, 1
    %p100 = por %p98, %p99
    %p101 = scmp.ne.s32.totalorder %s90, %s91
    %p102 = scmp.eq.s32.totalorder %s14, 0
    %p103 = por %p101, %p102
    %p104 = scmp.ne.s32.totalorder %s90, %s91
    %p105 = scmp.eq.s32.totalorder %s15, 1
    %p106 = por %p104, %p105
    %p108 = scmp.ne.s32.totalorder %s91, %s107
    %p109 = scmp.eq.s32.totalorder %s15, 0
    %p110 = por %p108, %p109
    %p111 = scmp.le.s32.totalorder 1, %s9
    %p112 = scmp.lt.s32.totalorder %s9, 3
    %p113 = pnand %p111, %p112
    %p114 = pneg %p113
    // Predicated region
    $region9: #{tpu_custom_call.1} parent=5 // pred_check
      _
    $region10: #{tpu_custom_call.1} parent=5 // pred_check_branch
      %116 = sbr.rel (%p113) target = $region12
    $region11: #{tpu_custom_call.1} parent=5 // pred_region
      %s117 = ssub.s32 %s9, 1
      // Predicated region
      $region13: #{tpu_custom_call.1} parent=11 // pred_check
        %p118 = pneg %p56
      $region14: #{tpu_custom_call.1} parent=11 // pred_check_branch
        %120 = sbr.rel (%p118) target = $region16
      $region15: #{tpu_custom_call.1} parent=11 // pred_region
        _
      $region16: #{tpu_custom_call.1} parent=11 // pred_fallthru
        _
      // Predicated region
      $region17: #{tpu_custom_call.1} parent=11 // pred_check
        %p121 = pneg %p77
      $region18: #{tpu_custom_call.1} parent=11 // pred_check_branch
        %123 = sbr.rel (%p121) target = $region20
      $region19: #{tpu_custom_call.1} parent=11 // pred_region
        _
      $region20: #{tpu_custom_call.1} parent=11 // pred_fallthru
        _
    $region12: #{tpu_custom_call.1} parent=5 // pred_fallthru
      _
    %p124 = scmp.lt.s32.totalorder %s9, 2
    // Predicated region
    $region21: #{tpu_custom_call.1} parent=5 // pred_check
      %p125 = pneg %p124
    $region22: #{tpu_custom_call.1} parent=5 // pred_check_branch
      %127 = sbr.rel (%p125) target = $region24
    $region23: #{tpu_custom_call.1} parent=5 // pred_region
      // Predicated region
      $region25: #{tpu_custom_call.1} parent=23 // pred_check
        %p128 = pneg %p29
      $region26: #{tpu_custom_call.1} parent=23 // pred_check_branch
        %130 = sbr.rel (%p128) target = $region28
      $region27: #{tpu_custom_call.1} parent=23 // pred_region
        %s131 = smul.u32 96, %s9
        %p132 = scmp.lt.s32.totalorder %s131, 191
        %s133 = scalar_select %p132, %s131, 191
        %s134 = smul.addr %s133, 8
        %s135 = scalar_lea.vmem %s0, %s134
        %s136 = smul.u32 96, %s9
      $region28: #{tpu_custom_call.1} parent=23 // pred_fallthru
        _
    $region24: #{tpu_custom_call.1} parent=5 // pred_fallthru
      _
    %p137 = scmp.le.s32.totalorder 1, %s9
    %p138 = scmp.lt.s32.totalorder %s9, 3
    %p139 = pnand %p137, %p138
    %p140 = pneg %p139
    // Predicated region
    $region29: #{tpu_custom_call.1} parent=5 // pred_check
      _
    $region30: #{tpu_custom_call.1} parent=5 // pred_check_branch
      %142 = sbr.rel (%p139) target = $region32
    $region31: #{tpu_custom_call.1} parent=5 // pred_region
      %s143 = ssub.s32 %s9, 1
      %s144 = smul.u32 96, %s14
      %p145 = scmp.lt.s32.totalorder %s144, 191
      %s146 = scalar_select %p145, %s144, 191
      %s147 = smul.addr %s146, 8
      %s148 = scalar_lea.vmem %s0, %s147
      %p149 = pneg %p35
      %p150 = pneg %p32
      %p151 = pneg %p56
      %p152 = pneg %p53
      %p153 = pneg %p77
      %p154 = pneg %p74
      %p155 = pneg %p103
      %p156 = pneg %p100
      %s157 = smul.u32 96, %s14
      %p158 = scmp.lt.s32.totalorder %s157, 191
      %s159 = scalar_select %p158, %s157, 191
      %s160 = smul.addr %s159, 8
      %s161 = scalar_lea.vmem %s3, %s160
      %s162 = smul.u32 96, %s14
      %p163 = scmp.lt.s32.totalorder %s162, 191
      %s164 = scalar_select %p163, %s162, 191
      %s165 = smul.addr %s164, 8
      %s166 = scalar_lea.vmem %s0, %s165
      %s167 = smul.u32 96, %s14
      %s168 = smul.u32 96, %s14
      %p169 = scmp.lt.s32.totalorder %s168, 191
      %s170 = scalar_select %p169, %s168, 191
      %s171 = smul.addr %s170, 8
      %s172 = scalar_lea.vmem %s3, %s171
      %s173 = smul.u32 96, %s14
      %v174 = vld [vmem:[%s166] sm:$0xff]
      %v175 = vld [vmem:[%s166 + $0x8] sm:$0xff]
      %v176 = vld [vmem:[%s166 + $0x10] sm:$0xff]
      %v177 = vld [vmem:[%s166 + $0x18] sm:$0xff]
      %v178 = vld [vmem:[%s166 + $0x20] sm:$0xff]
      %v179 = vld [vmem:[%s166 + $0x28] sm:$0xff]
      %v180 = vld [vmem:[%s166 + $0x30] sm:$0xff]
      %v181 = vld [vmem:[%s166 + $0x38] sm:$0xff]
      %v182 = vld [vmem:[%s166 + $0x40] sm:$0xff]
      %v183 = vld [vmem:[%s166 + $0x48] sm:$0xff]
      %v184 = vld [vmem:[%s166 + $0x50] sm:$0xff]
      %v185 = vld [vmem:[%s166 + $0x58] sm:$0xff]
      %v186 = vld [vmem:[%s166 + $0x60] sm:$0xff]
      %v187 = vld [vmem:[%s166 + $0x68] sm:$0xff]
      %v188 = vld [vmem:[%s166 + $0x70] sm:$0xff]
      %v189 = vld [vmem:[%s166 + $0x78] sm:$0xff]
      %v190 = vld [vmem:[%s166 + $0x80] sm:$0xff]
      %v191 = vld [vmem:[%s166 + $0x88] sm:$0xff]
      %v192 = vld [vmem:[%s166 + $0x90] sm:$0xff]
      %v193 = vld [vmem:[%s166 + $0x98] sm:$0xff]
      %v194 = vld [vmem:[%s166 + $0xa0] sm:$0xff]
      %v195 = vld [vmem:[%s166 + $0xa8] sm:$0xff]
      %v196 = vld [vmem:[%s166 + $0xb0] sm:$0xff]
      %v197 = vld [vmem:[%s166 + $0xb8] sm:$0xff]
      %v198 = vld [vmem:[%s166 + $0xc0] sm:$0xff]
      %v199 = vld [vmem:[%s166 + $0xc8] sm:$0xff]
      %v200 = vld [vmem:[%s166 + $0xd0] sm:$0xff]
      %v201 = vld [vmem:[%s166 + $0xd8] sm:$0xff]
      %v202 = vld [vmem:[%s166 + $0xe0] sm:$0xff]
      %v203 = vld [vmem:[%s166 + $0xe8] sm:$0xff]
      %v204 = vld [vmem:[%s166 + $0xf0] sm:$0xff]
      %v205 = vld [vmem:[%s166 + $0xf8] sm:$0xff]
      %v206 = vld [vmem:[%s166 + $0x100] sm:$0xff]
      %v207 = vld [vmem:[%s166 + $0x108] sm:$0xff]
      %v208 = vld [vmem:[%s166 + $0x110] sm:$0xff]
      %v209 = vld [vmem:[%s166 + $0x118] sm:$0xff]
      %v210 = vld [vmem:[%s166 + $0x120] sm:$0xff]
      %v211 = vld [vmem:[%s166 + $0x128] sm:$0xff]
      %v212 = vld [vmem:[%s166 + $0x130] sm:$0xff]
      %v213 = vld [vmem:[%s166 + $0x138] sm:$0xff]
      %v214 = vld [vmem:[%s166 + $0x140] sm:$0xff]
      %v215 = vld [vmem:[%s166 + $0x148] sm:$0xff]
      %v216 = vld [vmem:[%s166 + $0x150] sm:$0xff]
      %v217 = vld [vmem:[%s166 + $0x158] sm:$0xff]
      %v218 = vld [vmem:[%s166 + $0x160] sm:$0xff]
      %v219 = vld [vmem:[%s166 + $0x168] sm:$0xff]
      %v220 = vld [vmem:[%s166 + $0x170] sm:$0xff]
      %v221 = vld [vmem:[%s166 + $0x178] sm:$0xff]
      %v222 = vld [vmem:[%s166 + $0x180] sm:$0xff]
      %v223 = vld [vmem:[%s166 + $0x188] sm:$0xff]
      %v224 = vld [vmem:[%s166 + $0x190] sm:$0xff]
      %v225 = vld [vmem:[%s166 + $0x198] sm:$0xff]
      %v226 = vld [vmem:[%s166 + $0x1a0] sm:$0xff]
      %v227 = vld [vmem:[%s166 + $0x1a8] sm:$0xff]
      %v228 = vld [vmem:[%s166 + $0x1b0] sm:$0xff]
      %v229 = vld [vmem:[%s166 + $0x1b8] sm:$0xff]
      %v230 = vld [vmem:[%s166 + $0x1c0] sm:$0xff]
      %v231 = vld [vmem:[%s166 + $0x1c8] sm:$0xff]
      %v232 = vld [vmem:[%s166 + $0x1d0] sm:$0xff]
      %v233 = vld [vmem:[%s166 + $0x1d8] sm:$0xff]
      %v234 = vld [vmem:[%s166 + $0x1e0] sm:$0xff]
      %v235 = vld [vmem:[%s166 + $0x1e8] sm:$0xff]
      %v236 = vld [vmem:[%s166 + $0x1f0] sm:$0xff]
      %v237 = vld [vmem:[%s166 + $0x1f8] sm:$0xff]
      %v238 = vld [vmem:[%s166 + $0x200] sm:$0xff]
      %v239 = vld [vmem:[%s166 + $0x208] sm:$0xff]
      %v240 = vld [vmem:[%s166 + $0x210] sm:$0xff]
      %v241 = vld [vmem:[%s166 + $0x218] sm:$0xff]
      %v242 = vld [vmem:[%s166 + $0x220] sm:$0xff]
      %v243 = vld [vmem:[%s166 + $0x228] sm:$0xff]
      %v244 = vld [vmem:[%s166 + $0x230] sm:$0xff]
      %v245 = vld [vmem:[%s166 + $0x238] sm:$0xff]
      %v246 = vld [vmem:[%s166 + $0x240] sm:$0xff]
      %v247 = vld [vmem:[%s166 + $0x248] sm:$0xff]
      %v248 = vld [vmem:[%s166 + $0x250] sm:$0xff]
      %v249 = vld [vmem:[%s166 + $0x258] sm:$0xff]
      %v250 = vld [vmem:[%s166 + $0x260] sm:$0xff]
      %v251 = vld [vmem:[%s166 + $0x268] sm:$0xff]
      %v252 = vld [vmem:[%s166 + $0x270] sm:$0xff]
      %v253 = vld [vmem:[%s166 + $0x278] sm:$0xff]
      %v254 = vld [vmem:[%s166 + $0x280] sm:$0xff]
      %v255 = vld [vmem:[%s166 + $0x288] sm:$0xff]
      %v256 = vld [vmem:[%s166 + $0x290] sm:$0xff]
      %v257 = vld [vmem:[%s166 + $0x298] sm:$0xff]
      %v258 = vld [vmem:[%s166 + $0x2a0] sm:$0xff]
      %v259 = vld [vmem:[%s166 + $0x2a8] sm:$0xff]
      %v260 = vld [vmem:[%s166 + $0x2b0] sm:$0xff]
      %v261 = vld [vmem:[%s166 + $0x2b8] sm:$0xff]
      %v262 = vld [vmem:[%s166 + $0x2c0] sm:$0xff]
      %v263 = vld [vmem:[%s166 + $0x2c8] sm:$0xff]
      %v264 = vld [vmem:[%s166 + $0x2d0] sm:$0xff]
      %v265 = vld [vmem:[%s166 + $0x2d8] sm:$0xff]
      %v266 = vld [vmem:[%s166 + $0x2e0] sm:$0xff]
      %v267 = vld [vmem:[%s166 + $0x2e8] sm:$0xff]
      %v268 = vld [vmem:[%s166 + $0x2f0] sm:$0xff]
      %v269 = vld [vmem:[%s166 + $0x2f8] sm:$0xff]
      %v270 = vld [vmem:[%s1] sm:$0xff]
      %v271 = vld [vmem:[%s2] sm:$0x1]
      %v273 = vlaneseq
      %v274 = vshrl.u32 %v273, 7
      %v275 = vsub.s32 0, %v274
      %v276 = vrot.slane %v271, %v275
      %vm278 = vcmask 64512
      %v280 = vsel %vm278, %v174, 0
      %v283 = vsel %vm278, %v175, 0
      %v286 = vsel %vm278, %v176, 0
      %v289 = vsel %vm278, %v177, 0
      %v292 = vsel %vm278, %v178, 0
      %v295 = vsel %vm278, %v179, 0
      %v298 = vsel %vm278, %v180, 0
      %v301 = vsel %vm278, %v181, 0
      %v304 = vsel %vm278, %v182, 0
      %v307 = vsel %vm278, %v183, 0
      %v310 = vsel %vm278, %v184, 0
      %v313 = vsel %vm278, %v185, 0
      %v316 = vsel %vm278, %v186, 0
      %v319 = vsel %vm278, %v187, 0
      %v322 = vsel %vm278, %v188, 0
      %v325 = vsel %vm278, %v189, 0
      %v328 = vsel %vm278, %v190, 0
      %v331 = vsel %vm278, %v191, 0
      %v334 = vsel %vm278, %v192, 0
      %v337 = vsel %vm278, %v193, 0
      %v340 = vsel %vm278, %v194, 0
      %v343 = vsel %vm278, %v195, 0
      %v346 = vsel %vm278, %v196, 0
      %v349 = vsel %vm278, %v197, 0
      %v352 = vsel %vm278, %v198, 0
      %v355 = vsel %vm278, %v199, 0
      %v358 = vsel %vm278, %v200, 0
      %v361 = vsel %vm278, %v201, 0
      %v364 = vsel %vm278, %v202, 0
      %v367 = vsel %vm278, %v203, 0
      %v370 = vsel %vm278, %v204, 0
      %v373 = vsel %vm278, %v205, 0
      %v376 = vsel %vm278, %v206, 0
      %v379 = vsel %vm278, %v207, 0
      %v382 = vsel %vm278, %v208, 0
      %v385 = vsel %vm278, %v209, 0
      %v388 = vsel %vm278, %v210, 0
      %v391 = vsel %vm278, %v211, 0
      %v394 = vsel %vm278, %v212, 0
      %v397 = vsel %vm278, %v213, 0
      %v400 = vsel %vm278, %v214, 0
      %v403 = vsel %vm278, %v215, 0
      %v406 = vsel %vm278, %v216, 0
      %v409 = vsel %vm278, %v217, 0
      %v412 = vsel %vm278, %v218, 0
      %v415 = vsel %vm278, %v219, 0
      %v418 = vsel %vm278, %v220, 0
      %v421 = vsel %vm278, %v221, 0
      %v424 = vsel %vm278, %v222, 0
      %v427 = vsel %vm278, %v223, 0
      %v430 = vsel %vm278, %v224, 0
      %v433 = vsel %vm278, %v225, 0
      %v436 = vsel %vm278, %v226, 0
      %v439 = vsel %vm278, %v227, 0
      %v442 = vsel %vm278, %v228, 0
      %v445 = vsel %vm278, %v229, 0
      %v448 = vsel %vm278, %v230, 0
      %v451 = vsel %vm278, %v231, 0
      %v454 = vsel %vm278, %v232, 0
      %v457 = vsel %vm278, %v233, 0
      %v460 = vsel %vm278, %v234, 0
      %v463 = vsel %vm278, %v235, 0
      %v466 = vsel %vm278, %v236, 0
      %v469 = vsel %vm278, %v237, 0
      %v472 = vsel %vm278, %v238, 0
      %v475 = vsel %vm278, %v239, 0
      %v478 = vsel %vm278, %v240, 0
      %v481 = vsel %vm278, %v241, 0
      %v484 = vsel %vm278, %v242, 0
      %v487 = vsel %vm278, %v243, 0
      %v490 = vsel %vm278, %v244, 0
      %v493 = vsel %vm278, %v245, 0
      %v496 = vsel %vm278, %v246, 0
      %v499 = vsel %vm278, %v247, 0
      %v502 = vsel %vm278, %v248, 0
      %v505 = vsel %vm278, %v249, 0
      %v508 = vsel %vm278, %v250, 0
      %v511 = vsel %vm278, %v251, 0
      %v514 = vsel %vm278, %v252, 0
      %v517 = vsel %vm278, %v253, 0
      %v520 = vsel %vm278, %v254, 0
      %v523 = vsel %vm278, %v255, 0
      %v526 = vsel %vm278, %v256, 0
      %v529 = vsel %vm278, %v257, 0
      %v532 = vsel %vm278, %v258, 0
      %v535 = vsel %vm278, %v259, 0
      %v538 = vsel %vm278, %v260, 0
      %v541 = vsel %vm278, %v261, 0
      %v544 = vsel %vm278, %v262, 0
      %v547 = vsel %vm278, %v263, 0
      %v550 = vsel %vm278, %v264, 0
      %v553 = vsel %vm278, %v265, 0
      %v556 = vsel %vm278, %v266, 0
      %v559 = vsel %vm278, %v267, 0
      %v562 = vsel %vm278, %v268, 0
      %v565 = vsel %vm278, %v269, 0
      %567 = vmatprep.subr.mxu0 0.0
      %568 = vmatpush1.msra.mxu0 %v270
      %569 = vmatprep.subr.mxu0 0.0
      %570 = vmatpush1.msra.mxu0 0.0
      %571 = vmatprep.subr.mxu0 0.0
      %572 = vmatpush1.msra.mxu0 0.0
      %573 = vmatprep.subr.mxu0 0.0
      %574 = vmatpush1.msra.mxu0 0.0
      %575 = vmatprep.subr.mxu0 0.0
      %576 = vmatpush1.msra.mxu0 0.0
      %577 = vmatprep.subr.mxu0 0.0
      %578 = vmatpush1.msra.mxu0 0.0
      %579 = vmatprep.subr.mxu0 0.0
      %580 = vmatpush1.msra.mxu0 0.0
      %581 = vmatprep.subr.mxu0 0.0
      %582 = vmatpush1.msra.mxu0 0.0
      %583 = vmatprep.subr.mxu0 0.0
      %584 = vmatpush1.msra.mxu0 0.0
      %585 = vmatprep.subr.mxu0 0.0
      %586 = vmatpush1.msra.mxu0 0.0
      %587 = vmatprep.subr.mxu0 0.0
      %588 = vmatpush1.msra.mxu0 0.0
      %589 = vmatprep.subr.mxu0 0.0
      %590 = vmatpush1.msra.mxu0 0.0
      %591 = vmatprep.subr.mxu0 0.0
      %592 = vmatpush1.msra.mxu0 0.0
      %593 = vmatprep.subr.mxu0 0.0
      %594 = vmatpush1.msra.mxu0 0.0
      %595 = vmatprep.subr.mxu0 0.0
      %596 = vmatpush1.msra.mxu0 0.0
      %597 = vmatprep.subr.mxu0 0.0
      %598 = vmatpush1.msra.mxu0 0.0
      %599 = vmatprep.subr.mxu0 0.0
      %600 = vmatpush1.msra.mxu0 0.0
      %601 = vmatprep.subr.mxu0 0.0
      %602 = vmatpush1.msra.mxu0 0.0
      %603 = vmatprep.subr.mxu0 0.0
      %604 = vmatpush1.msra.mxu0 0.0
      %605 = vmatprep.subr.mxu0 0.0
      %606 = vmatpush1.msra.mxu0 0.0
      %607 = vmatprep.subr.mxu0 0.0
      %608 = vmatpush1.msra.mxu0 0.0
      %609 = vmatprep.subr.mxu0 0.0
      %610 = vmatpush1.msra.mxu0 0.0
      %611 = vmatprep.subr.mxu0 0.0
      %612 = vmatpush1.msra.mxu0 0.0
      %613 = vmatprep.subr.mxu0 0.0
      %614 = vmatpush1.msra.mxu0 0.0
      %615 = vmatprep.subr.mxu0 0.0
      %616 = vmatpush1.msra.mxu0 0.0
      %617 = vmatprep.subr.mxu0 0.0
      %618 = vmatpush1.msra.mxu0 0.0
      %619 = vmatprep.subr.mxu0 0.0
      %620 = vmatpush1.msra.mxu0 0.0
      %621 = vmatprep.subr.mxu0 0.0
      %622 = vmatpush1.msra.mxu0 0.0
      %623 = vmatprep.subr.mxu0 0.0
      %624 = vmatpush1.msra.mxu0 0.0
      %625 = vmatprep.subr.mxu0 0.0
      %626 = vmatpush1.msra.mxu0 0.0
      %627 = vmatprep.subr.mxu0 0.0
      %628 = vmatpush1.msra.mxu0 0.0
      %629 = vmatprep.subr.mxu0 0.0
      %630 = vmatpush1.msra.mxu0 0.0
      %631 = vmatprep.mubr.f32.mxu0 0.0
      %632 = vmatmul.mubr.f32.gmra.mrb[0].mxu0 %v280
      %v633 = vpop.f32.mrb[0].mxu0
      %v634 = vadd.f32 %v276, %v633
      %v635 = vpop.f32.mrb[0].mxu0
      %636 = vmatprep.mubr.f32.mxu0 0.0
      %637 = vmatmul.mubr.f32.gmra.mrb[0].mxu0 %v283
      %v638 = vpop.f32.mrb[0].mxu0
      %v639 = vadd.f32 %v276, %v638
      %v640 = vpop.f32.mrb[0].mxu0
      %641 = vmatprep.mubr.f32.mxu0 0.0
      %642 = vmatmul.mubr.f32.gmra.mrb[0].mxu0 %v286
      %v643 = vpop.f32.mrb[0].mxu0
      %v644 = vadd.f32 %v276, %v643
      %v645 = vpop.f32.mrb[0].mxu0
      %646 = vmatprep.mubr.f32.mxu0 0.0
      %647 = vmatmul.mubr.f32.gmra.mrb[0].mxu0 %v289
      %v648 = vpop.f32.mrb[0].mxu0
      %v649 = vadd.f32 %v276, %v648
      %v650 = vpop.f32.mrb[0].mxu0
      %651 = vmatprep.mubr.f32.mxu0 0.0
      %652 = vmatmul.mubr.f32.gmra.mrb[0].mxu0 %v292
      %v653 = vpop.f32.mrb[0].mxu0
      %v654 = vadd.f32 %v276, %v653
      %v655 = vpop.f32.mrb[0].mxu0
      %656 = vmatprep.mubr.f32.mxu0 0.0
      %657 = vmatmul.mubr.f32.gmra.mrb[0].mxu0 %v295
      %v658 = vpop.f32.mrb[0].mxu0
      %v659 = vadd.f32 %v276, %v658
      %v660 = vpop.f32.mrb[0].mxu0
      %661 = vmatprep.mubr.f32.mxu0 0.0
      %662 = vmatmul.mubr.f32.gmra.mrb[0].mxu0 %v298
      %v663 = vpop.f32.mrb[0].mxu0
      %v664 = vadd.f32 %v276, %v663
      %v665 = vpop.f32.mrb[0].mxu0
      %666 = vmatprep.mubr.f32.mxu0 0.0
      %667 = vmatmul.mubr.f32.gmra.mrb[0].mxu0 %v301
      %v668 = vpop.f32.mrb[0].mxu0
      %v669 = vadd.f32 %v276, %v668
      %v670 = vpop.f32.mrb[0].mxu0
      %671 = vmatprep.mubr.f32.mxu0 0.0
      %672 = vmatmul.mubr.f32.gmra.mrb[0].mxu0 %v304
      %v673 = vpop.f32.mrb[0].mxu0
      %v674 = vadd.f32 %v276, %v673
      %v675 = vpop.f32.mrb[0].mxu0
      %676 = vmatprep.mubr.f32.mxu0 0.0
      %677 = vmatmul.mubr.f32.gmra.mrb[0].mxu0 %v307
      %v678 = vpop.f32.mrb[0].mxu0
      %v679 = vadd.f32 %v276, %v678
      %v680 = vpop.f32.mrb[0].mxu0
      %681 = vmatprep.mubr.f32.mxu0 0.0
      %682 = vmatmul.mubr.f32.gmra.mrb[0].mxu0 %v310
      %v683 = vpop.f32.mrb[0].mxu0
      %v684 = vadd.f32 %v276, %v683
      %v685 = vpop.f32.mrb[0].mxu0
      %686 = vmatprep.mubr.f32.mxu0 0.0
      %687 = vmatmul.mubr.f32.gmra.mrb[0].mxu0 %v313
      %v688 = vpop.f32.mrb[0].mxu0
      %v689 = vadd.f32 %v276, %v688
      %v690 = vpop.f32.mrb[0].mxu0
      %691 = vmatprep.mubr.f32.mxu0 0.0
      %692 = vmatmul.mubr.f32.gmra.mrb[0].mxu0 %v316
      %v693 = vpop.f32.mrb[0].mxu0
      %v694 = vadd.f32 %v276, %v693
      %v695 = vpop.f32.mrb[0].mxu0
      %696 = vmatprep.mubr.f32.mxu0 0.0
      %697 = vmatmul.mubr.f32.gmra.mrb[0].mxu0 %v319
      %v698 = vpop.f32.mrb[0].mxu0
      %v699 = vadd.f32 %v276, %v698
      %v700 = vpop.f32.mrb[0].mxu0
      %701 = vmatprep.mubr.f32.mxu0 0.0
      %702 = vmatmul.mubr.f32.gmra.mrb[0].mxu0 %v322
      %v703 = vpop.f32.mrb[0].mxu0
      %v704 = vadd.f32 %v276, %v703
      %v705 = vpop.f32.mrb[0].mxu0
      %706 = vmatprep.mubr.f32.mxu0 0.0
      %707 = vmatmul.mubr.f32.gmra.mrb[0].mxu0 %v325
      %v708 = vpop.f32.mrb[0].mxu0
      %v709 = vadd.f32 %v276, %v708
      %v710 = vpop.f32.mrb[0].mxu0
      %711 = vmatprep.mubr.f32.mxu0 0.0
      %712 = vmatmul.mubr.f32.gmra.mrb[0].mxu0 %v328
      %v713 = vpop.f32.mrb[0].mxu0
      %v714 = vadd.f32 %v276, %v713
      %v715 = vpop.f32.mrb[0].mxu0
      %716 = vmatprep.mubr.f32.mxu0 0.0
      %717 = vmatmul.mubr.f32.gmra.mrb[0].mxu0 %v331
      %v718 = vpop.f32.mrb[0].mxu0
      %v719 = vadd.f32 %v276, %v718
      %v720 = vpop.f32.mrb[0].mxu0
      %721 = vmatprep.mubr.f32.mxu0 0.0
      %722 = vmatmul.mubr.f32.gmra.mrb[0].mxu0 %v334
      %v723 = vpop.f32.mrb[0].mxu0
      %v724 = vadd.f32 %v276, %v723
      %v725 = vpop.f32.mrb[0].mxu0
      %726 = vmatprep.mubr.f32.mxu0 0.0
      %727 = vmatmul.mubr.f32.gmra.mrb[0].mxu0 %v337
      %v728 = vpop.f32.mrb[0].mxu0
      %v729 = vadd.f32 %v276, %v728
      %v730 = vpop.f32.mrb[0].mxu0
      %731 = vmatprep.mubr.f32.mxu0 0.0
      %732 = vmatmul.mubr.f32.gmra.mrb[0].mxu0 %v340
      %v733 = vpop.f32.mrb[0].mxu0
      %v734 = vadd.f32 %v276, %v733
      %v735 = vpop.f32.mrb[0].mxu0
      %736 = vmatprep.mubr.f32.mxu0 0.0
      %737 = vmatmul.mubr.f32.gmra.mrb[0].mxu0 %v343
      %v738 = vpop.f32.mrb[0].mxu0
      %v739 = vadd.f32 %v276, %v738
      %v740 = vpop.f32.mrb[0].mxu0
      %741 = vmatprep.mubr.f32.mxu0 0.0
      %742 = vmatmul.mubr.f32.gmra.mrb[0].mxu0 %v346
      %v743 = vpop.f32.mrb[0].mxu0
      %v744 = vadd.f32 %v276, %v743
      %v745 = vpop.f32.mrb[0].mxu0
      %746 = vmatprep.mubr.f32.mxu0 0.0
      %747 = vmatmul.mubr.f32.gmra.mrb[0].mxu0 %v349
      %v748 = vpop.f32.mrb[0].mxu0
      %v749 = vadd.f32 %v276, %v748
      %v750 = vpop.f32.mrb[0].mxu0
      %751 = vmatprep.mubr.f32.mxu0 0.0
      %752 = vmatmul.mubr.f32.gmra.mrb[0].mxu0 %v352
      %v753 = vpop.f32.mrb[0].mxu0
      %v754 = vadd.f32 %v276, %v753
      %v755 = vpop.f32.mrb[0].mxu0
      %756 = vmatprep.mubr.f32.mxu0 0.0
      %757 = vmatmul.mubr.f32.gmra.mrb[0].mxu0 %v355
      %v758 = vpop.f32.mrb[0].mxu0
      %v759 = vadd.f32 %v276, %v758
      %v760 = vpop.f32.mrb[0].mxu0
      %761 = vmatprep.mubr.f32.mxu0 0.0
      %762 = vmatmul.mubr.f32.gmra.mrb[0].mxu0 %v358
      %v763 = vpop.f32.mrb[0].mxu0
      %v764 = vadd.f32 %v276, %v763
      %v765 = vpop.f32.mrb[0].mxu0
      %766 = vmatprep.mubr.f32.mxu0 0.0
      %767 = vmatmul.mubr.f32.gmra.mrb[0].mxu0 %v361
      %v768 = vpop.f32.mrb[0].mxu0
      %v769 = vadd.f32 %v276, %v768
      %v770 = vpop.f32.mrb[0].mxu0
      %771 = vmatprep.mubr.f32.mxu0 0.0
      %772 = vmatmul.mubr.f32.gmra.mrb[0].mxu0 %v364
      %v773 = vpop.f32.mrb[0].mxu0
      %v774 = vadd.f32 %v276, %v773
      %v775 = vpop.f32.mrb[0].mxu0
      %776 = vmatprep.mubr.f32.mxu0 0.0
      %777 = vmatmul.mubr.f32.gmra.mrb[0].mxu0 %v367
      %v778 = vpop.f32.mrb[0].mxu0
      %v779 = vadd.f32 %v276, %v778
      %v780 = vpop.f32.mrb[0].mxu0
      %781 = vmatprep.mubr.f32.mxu0 0.0
      %782 = vmatmul.mubr.f32.gmra.mrb[0].mxu0 %v370
      %v783 = vpop.f32.mrb[0].mxu0
      %v784 = vadd.f32 %v276, %v783
      %v785 = vpop.f32.mrb[0].mxu0
      %786 = vmatprep.mubr.f32.mxu0 0.0
      %787 = vmatmul.mubr.f32.gmra.mrb[0].mxu0 %v373
      %v788 = vpop.f32.mrb[0].mxu0
      %v789 = vadd.f32 %v276, %v788
      %v790 = vpop.f32.mrb[0].mxu0
      %791 = vmatprep.mubr.f32.mxu0 0.0
      %792 = vmatmul.mubr.f32.gmra.mrb[0].mxu0 %v376
      %v793 = vpop.f32.mrb[0].mxu0
      %v794 = vadd.f32 %v276, %v793
      %v795 = vpop.f32.mrb[0].mxu0
      %796 = vmatprep.mubr.f32.mxu0 0.0
      %797 = vmatmul.mubr.f32.gmra.mrb[0].mxu0 %v379
      %v798 = vpop.f32.mrb[0].mxu0
      %v799 = vadd.f32 %v276, %v798
      %v800 = vpop.f32.mrb[0].mxu0
      %801 = vmatprep.mubr.f32.mxu0 0.0
      %802 = vmatmul.mubr.f32.gmra.mrb[0].mxu0 %v382
      %v803 = vpop.f32.mrb[0].mxu0
      %v804 = vadd.f32 %v276, %v803
      %v805 = vpop.f32.mrb[0].mxu0
      %806 = vmatprep.mubr.f32.mxu0 0.0
      %807 = vmatmul.mubr.f32.gmra.mrb[0].mxu0 %v385
      %v808 = vpop.f32.mrb[0].mxu0
      %v809 = vadd.f32 %v276, %v808
      %v810 = vpop.f32.mrb[0].mxu0
      %811 = vmatprep.mubr.f32.mxu0 0.0
      %812 = vmatmul.mubr.f32.gmra.mrb[0].mxu0 %v388
      %v813 = vpop.f32.mrb[0].mxu0
      %v814 = vadd.f32 %v276, %v813
      %v815 = vpop.f32.mrb[0].mxu0
      %816 = vmatprep.mubr.f32.mxu0 0.0
      %817 = vmatmul.mubr.f32.gmra.mrb[0].mxu0 %v391
      %v818 = vpop.f32.mrb[0].mxu0
      %v819 = vadd.f32 %v276, %v818
      %v820 = vpop.f32.mrb[0].mxu0
      %821 = vmatprep.mubr.f32.mxu0 0.0
      %822 = vmatmul.mubr.f32.gmra.mrb[0].mxu0 %v394
      %v823 = vpop.f32.mrb[0].mxu0
      %v824 = vadd.f32 %v276, %v823
      %v825 = vpop.f32.mrb[0].mxu0
      %826 = vmatprep.mubr.f32.mxu0 0.0
      %827 = vmatmul.mubr.f32.gmra.mrb[0].mxu0 %v397
      %v828 = vpop.f32.mrb[0].mxu0
      %v829 = vadd.f32 %v276, %v828
      %v830 = vpop.f32.mrb[0].mxu0
      %831 = vmatprep.mubr.f32.mxu0 0.0
      %832 = vmatmul.mubr.f32.gmra.mrb[0].mxu0 %v400
      %v833 = vpop.f32.mrb[0].mxu0
      %v834 = vadd.f32 %v276, %v833
      %v835 = vpop.f32.mrb[0].mxu0
      %836 = vmatprep.mubr.f32.mxu0 0.0
      %837 = vmatmul.mubr.f32.gmra.mrb[0].mxu0 %v403
      %v838 = vpop.f32.mrb[0].mxu0
      %v839 = vadd.f32 %v276, %v838
      %v840 = vpop.f32.mrb[0].mxu0
      %841 = vmatprep.mubr.f32.mxu0 0.0
      %842 = vmatmul.mubr.f32.gmra.mrb[0].mxu0 %v406
      %v843 = vpop.f32.mrb[0].mxu0
      %v844 = vadd.f32 %v276, %v843
      %v845 = vpop.f32.mrb[0].mxu0
      %846 = vmatprep.mubr.f32.mxu0 0.0
      %847 = vmatmul.mubr.f32.gmra.mrb[0].mxu0 %v409
      %v848 = vpop.f32.mrb[0].mxu0
      %v849 = vadd.f32 %v276, %v848
      %v850 = vpop.f32.mrb[0].mxu0
      %851 = vmatprep.mubr.f32.mxu0 0.0
      %852 = vmatmul.mubr.f32.gmra.mrb[0].mxu0 %v412
      %v853 = vpop.f32.mrb[0].mxu0
      %v854 = vadd.f32 %v276, %v853
      %v855 = vpop.f32.mrb[0].mxu0
      %856 = vmatprep.mubr.f32.mxu0 0.0
      %857 = vmatmul.mubr.f32.gmra.mrb[0].mxu0 %v415
      %v858 = vpop.f32.mrb[0].mxu0
      %v859 = vadd.f32 %v276, %v858
      %v860 = vpop.f32.mrb[0].mxu0
      %861 = vmatprep.mubr.f32.mxu0 0.0
      %862 = vmatmul.mubr.f32.gmra.mrb[0].mxu0 %v418
      %v863 = vpop.f32.mrb[0].mxu0
      %v864 = vadd.f32 %v276, %v863
      %v865 = vpop.f32.mrb[0].mxu0
      %866 = vmatprep.mubr.f32.mxu0 0.0
      %867 = vmatmul.mubr.f32.gmra.mrb[0].mxu0 %v421
      %v868 = vpop.f32.mrb[0].mxu0
      %v869 = vadd.f32 %v276, %v868
      %v870 = vpop.f32.mrb[0].mxu0
      %871 = vmatprep.mubr.f32.mxu0 0.0
      %872 = vmatmul.mubr.f32.gmra.mrb[0].mxu0 %v424
      %v873 = vpop.f32.mrb[0].mxu0
      %v874 = vadd.f32 %v276, %v873
      %v875 = vpop.f32.mrb[0].mxu0
      %876 = vmatprep.mubr.f32.mxu0 0.0
      %877 = vmatmul.mubr.f32.gmra.mrb[0].mxu0 %v427
      %v878 = vpop.f32.mrb[0].mxu0
      %v879 = vadd.f32 %v276, %v878
      %v880 = vpop.f32.mrb[0].mxu0
      %881 = vmatprep.mubr.f32.mxu0 0.0
      %882 = vmatmul.mubr.f32.gmra.mrb[0].mxu0 %v430
      %v883 = vpop.f32.mrb[0].mxu0
      %v884 = vadd.f32 %v276, %v883
      %v885 = vpop.f32.mrb[0].mxu0
      %886 = vmatprep.mubr.f32.mxu0 0.0
      %887 = vmatmul.mubr.f32.gmra.mrb[0].mxu0 %v433
      %v888 = vpop.f32.mrb[0].mxu0
      %v889 = vadd.f32 %v276, %v888
      %v890 = vpop.f32.mrb[0].mxu0
      %891 = vmatprep.mubr.f32.mxu0 0.0
      %892 = vmatmul.mubr.f32.gmra.mrb[0].mxu0 %v436
      %v893 = vpop.f32.mrb[0].mxu0
      %v894 = vadd.f32 %v276, %v893
      %v895 = vpop.f32.mrb[0].mxu0
      %896 = vmatprep.mubr.f32.mxu0 0.0
      %897 = vmatmul.mubr.f32.gmra.mrb[0].mxu0 %v439
      %v898 = vpop.f32.mrb[0].mxu0
      %v899 = vadd.f32 %v276, %v898
      %v900 = vpop.f32.mrb[0].mxu0
      %901 = vmatprep.mubr.f32.mxu0 0.0
      %902 = vmatmul.mubr.f32.gmra.mrb[0].mxu0 %v442
      %v903 = vpop.f32.mrb[0].mxu0
      %v904 = vadd.f32 %v276, %v903
      %v905 = vpop.f32.mrb[0].mxu0
      %906 = vmatprep.mubr.f32.mxu0 0.0
      %907 = vmatmul.mubr.f32.gmra.mrb[0].mxu0 %v445
      %v908 = vpop.f32.mrb[0].mxu0
      %v909 = vadd.f32 %v276, %v908
      %v910 = vpop.f32.mrb[0].mxu0
      %911 = vmatprep.mubr.f32.mxu0 0.0
      %912 = vmatmul.mubr.f32.gmra.mrb[0].mxu0 %v448
      %v913 = vpop.f32.mrb[0].mxu0
      %v914 = vadd.f32 %v276, %v913
      %v915 = vpop.f32.mrb[0].mxu0
      %916 = vmatprep.mubr.f32.mxu0 0.0
      %917 = vmatmul.mubr.f32.gmra.mrb[0].mxu0 %v451
      %v918 = vpop.f32.mrb[0].mxu0
      %v919 = vadd.f32 %v276, %v918
      %v920 = vpop.f32.mrb[0].mxu0
      %921 = vmatprep.mubr.f32.mxu0 0.0
      %922 = vmatmul.mubr.f32.gmra.mrb[0].mxu0 %v454
      %v923 = vpop.f32.mrb[0].mxu0
      %v924 = vadd.f32 %v276, %v923
      %v925 = vpop.f32.mrb[0].mxu0
      %926 = vmatprep.mubr.f32.mxu0 0.0
      %927 = vmatmul.mubr.f32.gmra.mrb[0].mxu0 %v457
      %v928 = vpop.f32.mrb[0].mxu0
      %v929 = vadd.f32 %v276, %v928
      %v930 = vpop.f32.mrb[0].mxu0
      %931 = vmatprep.mubr.f32.mxu0 0.0
      %932 = vmatmul.mubr.f32.gmra.mrb[0].mxu0 %v460
      %v933 = vpop.f32.mrb[0].mxu0
      %v934 = vadd.f32 %v276, %v933
      %v935 = vpop.f32.mrb[0].mxu0
      %936 = vmatprep.mubr.f32.mxu0 0.0
      %937 = vmatmul.mubr.f32.gmra.mrb[0].mxu0 %v463
      %v938 = vpop.f32.mrb[0].mxu0
      %v939 = vadd.f32 %v276, %v938
      %v940 = vpop.f32.mrb[0].mxu0
      %941 = vmatprep.mubr.f32.mxu0 0.0
      %942 = vmatmul.mubr.f32.gmra.mrb[0].mxu0 %v466
      %v943 = vpop.f32.mrb[0].mxu0
      %v944 = vadd.f32 %v276, %v943
      %v945 = vpop.f32.mrb[0].mxu0
      %946 = vmatprep.mubr.f32.mxu0 0.0
      %947 = vmatmul.mubr.f32.gmra.mrb[0].mxu0 %v469
      %v948 = vpop.f32.mrb[0].mxu0
      %v949 = vadd.f32 %v276, %v948
      %v950 = vpop.f32.mrb[0].mxu0
      %951 = vmatprep.mubr.f32.mxu0 0.0
      %952 = vmatmul.mubr.f32.gmra.mrb[0].mxu0 %v472
      %v953 = vpop.f32.mrb[0].mxu0
      %v954 = vadd.f32 %v276, %v953
      %v955 = vpop.f32.mrb[0].mxu0
      %956 = vmatprep.mubr.f32.mxu0 0.0
      %957 = vmatmul.mubr.f32.gmra.mrb[0].mxu0 %v475
      %v958 = vpop.f32.mrb[0].mxu0
      %v959 = vadd.f32 %v276, %v958
      %v960 = vpop.f32.mrb[0].mxu0
      %961 = vmatprep.mubr.f32.mxu0 0.0
      %962 = vmatmul.mubr.f32.gmra.mrb[0].mxu0 %v478
      %v963 = vpop.f32.mrb[0].mxu0
      %v964 = vadd.f32 %v276, %v963
      %v965 = vpop.f32.mrb[0].mxu0
      %966 = vmatprep.mubr.f32.mxu0 0.0
      %967 = vmatmul.mubr.f32.gmra.mrb[0].mxu0 %v481
      %v968 = vpop.f32.mrb[0].mxu0
      %v969 = vadd.f32 %v276, %v968
      %v970 = vpop.f32.mrb[0].mxu0
      %971 = vmatprep.mubr.f32.mxu0 0.0
      %972 = vmatmul.mubr.f32.gmra.mrb[0].mxu0 %v484
      %v973 = vpop.f32.mrb[0].mxu0
      %v974 = vadd.f32 %v276, %v973
      %v975 = vpop.f32.mrb[0].mxu0
      %976 = vmatprep.mubr.f32.mxu0 0.0
      %977 = vmatmul.mubr.f32.gmra.mrb[0].mxu0 %v487
      %v978 = vpop.f32.mrb[0].mxu0
      %v979 = vadd.f32 %v276, %v978
      %v980 = vpop.f32.mrb[0].mxu0
      %981 = vmatprep.mubr.f32.mxu0 0.0
      %982 = vmatmul.mubr.f32.gmra.mrb[0].mxu0 %v490
      %v983 = vpop.f32.mrb[0].mxu0
      %v984 = vadd.f32 %v276, %v983
      %v985 = vpop.f32.mrb[0].mxu0
      %986 = vmatprep.mubr.f32.mxu0 0.0
      %987 = vmatmul.mubr.f32.gmra.mrb[0].mxu0 %v493
      %v988 = vpop.f32.mrb[0].mxu0
      %v989 = vadd.f32 %v276, %v988
      %v990 = vpop.f32.mrb[0].mxu0
      %991 = vmatprep.mubr.f32.mxu0 0.0
      %992 = vmatmul.mubr.f32.gmra.mrb[0].mxu0 %v496
      %v993 = vpop.f32.mrb[0].mxu0
      %v994 = vadd.f32 %v276, %v993
      %v995 = vpop.f32.mrb[0].mxu0
      %996 = vmatprep.mubr.f32.mxu0 0.0
      %997 = vmatmul.mubr.f32.gmra.mrb[0].mxu0 %v499
      %v998 = vpop.f32.mrb[0].mxu0
      %v999 = vadd.f32 %v276, %v998
      %v1000 = vpop.f32.mrb[0].mxu0
      %1001 = vmatprep.mubr.f32.mxu0 0.0
      %1002 = vmatmul.mubr.f32.gmra.mrb[0].mxu0 %v502
      %v1003 = vpop.f32.mrb[0].mxu0
      %v1004 = vadd.f32 %v276, %v1003
      %v1005 = vpop.f32.mrb[0].mxu0
      %1006 = vmatprep.mubr.f32.mxu0 0.0
      %1007 = vmatmul.mubr.f32.gmra.mrb[0].mxu0 %v505
      %v1008 = vpop.f32.mrb[0].mxu0
      %v1009 = vadd.f32 %v276, %v1008
      %v1010 = vpop.f32.mrb[0].mxu0
      %1011 = vmatprep.mubr.f32.mxu0 0.0
      %1012 = vmatmul.mubr.f32.gmra.mrb[0].mxu0 %v508
      %v1013 = vpop.f32.mrb[0].mxu0
      %v1014 = vadd.f32 %v276, %v1013
      %v1015 = vpop.f32.mrb[0].mxu0
      %1016 = vmatprep.mubr.f32.mxu0 0.0
      %1017 = vmatmul.mubr.f32.gmra.mrb[0].mxu0 %v511
      %v1018 = vpop.f32.mrb[0].mxu0
      %v1019 = vadd.f32 %v276, %v1018
      %v1020 = vpop.f32.mrb[0].mxu0
      %1021 = vmatprep.mubr.f32.mxu0 0.0
      %1022 = vmatmul.mubr.f32.gmra.mrb[0].mxu0 %v514
      %v1023 = vpop.f32.mrb[0].mxu0
      %v1024 = vadd.f32 %v276, %v1023
      %v1025 = vpop.f32.mrb[0].mxu0
      %1026 = vmatprep.mubr.f32.mxu0 0.0
      %1027 = vmatmul.mubr.f32.gmra.mrb[0].mxu0 %v517
      %v1028 = vpop.f32.mrb[0].mxu0
      %v1029 = vadd.f32 %v276, %v1028
      %v1030 = vpop.f32.mrb[0].mxu0
      %1031 = vmatprep.mubr.f32.mxu0 0.0
      %1032 = vmatmul.mubr.f32.gmra.mrb[0].mxu0 %v520
      %v1033 = vpop.f32.mrb[0].mxu0
      %v1034 = vadd.f32 %v276, %v1033
      %v1035 = vpop.f32.mrb[0].mxu0
      %1036 = vmatprep.mubr.f32.mxu0 0.0
      %1037 = vmatmul.mubr.f32.gmra.mrb[0].mxu0 %v523
      %v1038 = vpop.f32.mrb[0].mxu0
      %v1039 = vadd.f32 %v276, %v1038
      %v1040 = vpop.f32.mrb[0].mxu0
      %1041 = vmatprep.mubr.f32.mxu0 0.0
      %1042 = vmatmul.mubr.f32.gmra.mrb[0].mxu0 %v526
      %v1043 = vpop.f32.mrb[0].mxu0
      %v1044 = vadd.f32 %v276, %v1043
      %v1045 = vpop.f32.mrb[0].mxu0
      %1046 = vmatprep.mubr.f32.mxu0 0.0
      %1047 = vmatmul.mubr.f32.gmra.mrb[0].mxu0 %v529
      %v1048 = vpop.f32.mrb[0].mxu0
      %v1049 = vadd.f32 %v276, %v1048
      %v1050 = vpop.f32.mrb[0].mxu0
      %1051 = vmatprep.mubr.f32.mxu0 0.0
      %1052 = vmatmul.mubr.f32.gmra.mrb[0].mxu0 %v532
      %v1053 = vpop.f32.mrb[0].mxu0
      %v1054 = vadd.f32 %v276, %v1053
      %v1055 = vpop.f32.mrb[0].mxu0
      %1056 = vmatprep.mubr.f32.mxu0 0.0
      %1057 = vmatmul.mubr.f32.gmra.mrb[0].mxu0 %v535
      %v1058 = vpop.f32.mrb[0].mxu0
      %v1059 = vadd.f32 %v276, %v1058
      %v1060 = vpop.f32.mrb[0].mxu0
      %1061 = vmatprep.mubr.f32.mxu0 0.0
      %1062 = vmatmul.mubr.f32.gmra.mrb[0].mxu0 %v538
      %v1063 = vpop.f32.mrb[0].mxu0
      %v1064 = vadd.f32 %v276, %v1063
      %v1065 = vpop.f32.mrb[0].mxu0
      %1066 = vmatprep.mubr.f32.mxu0 0.0
      %1067 = vmatmul.mubr.f32.gmra.mrb[0].mxu0 %v541
      %v1068 = vpop.f32.mrb[0].mxu0
      %v1069 = vadd.f32 %v276, %v1068
      %v1070 = vpop.f32.mrb[0].mxu0
      %1071 = vmatprep.mubr.f32.mxu0 0.0
      %1072 = vmatmul.mubr.f32.gmra.mrb[0].mxu0 %v544
      %v1073 = vpop.f32.mrb[0].mxu0
      %v1074 = vadd.f32 %v276, %v1073
      %v1075 = vpop.f32.mrb[0].mxu0
      %1076 = vmatprep.mubr.f32.mxu0 0.0
      %1077 = vmatmul.mubr.f32.gmra.mrb[0].mxu0 %v547
      %v1078 = vpop.f32.mrb[0].mxu0
      %v1079 = vadd.f32 %v276, %v1078
      %v1080 = vpop.f32.mrb[0].mxu0
      %1081 = vmatprep.mubr.f32.mxu0 0.0
      %1082 = vmatmul.mubr.f32.gmra.mrb[0].mxu0 %v550
      %v1083 = vpop.f32.mrb[0].mxu0
      %v1084 = vadd.f32 %v276, %v1083
      %v1085 = vpop.f32.mrb[0].mxu0
      %1086 = vmatprep.mubr.f32.mxu0 0.0
      %1087 = vmatmul.mubr.f32.gmra.mrb[0].mxu0 %v553
      %v1088 = vpop.f32.mrb[0].mxu0
      %v1089 = vadd.f32 %v276, %v1088
      %v1090 = vpop.f32.mrb[0].mxu0
      %1091 = vmatprep.mubr.f32.mxu0 0.0
      %1092 = vmatmul.mubr.f32.gmra.mrb[0].mxu0 %v556
      %v1093 = vpop.f32.mrb[0].mxu0
      %v1094 = vadd.f32 %v276, %v1093
      %v1095 = vpop.f32.mrb[0].mxu0
      %1096 = vmatprep.mubr.f32.mxu0 0.0
      %1097 = vmatmul.mubr.f32.gmra.mrb[0].mxu0 %v559
      %v1098 = vpop.f32.mrb[0].mxu0
      %v1099 = vadd.f32 %v276, %v1098
      %v1100 = vpop.f32.mrb[0].mxu0
      %1101 = vmatprep.mubr.f32.mxu0 0.0
      %1102 = vmatmul.mubr.f32.gmra.mrb[0].mxu0 %v562
      %v1103 = vpop.f32.mrb[0].mxu0
      %v1104 = vadd.f32 %v276, %v1103
      %v1105 = vpop.f32.mrb[0].mxu0
      %1106 = vmatprep.mubr.f32.mxu0 0.0
      %1107 = vmatmul.mubr.f32.gmra.mrb[0].mxu0 %v565
      %v1108 = vpop.f32.mrb[0].mxu0
      %v1109 = vadd.f32 %v276, %v1108
      %v1110 = vpop.f32.mrb[0].mxu0
      %1111 = vdwg.mxu0
      %v1112 = vmax.f32 %v634, 0.0
      %v1113 = vmax.f32 %v639, 0.0
      %v1114 = vmax.f32 %v644, 0.0
      %v1115 = vmax.f32 %v649, 0.0
      %v1116 = vmax.f32 %v654, 0.0
      %v1117 = vmax.f32 %v659, 0.0
      %v1118 = vmax.f32 %v664, 0.0
      %v1119 = vmax.f32 %v669, 0.0
      %v1120 = vmax.f32 %v674, 0.0
      %v1121 = vmax.f32 %v679, 0.0
      %v1122 = vmax.f32 %v684, 0.0
      %v1123 = vmax.f32 %v689, 0.0
      %v1124 = vmax.f32 %v694, 0.0
      %v1125 = vmax.f32 %v699, 0.0
      %v1126 = vmax.f32 %v704, 0.0
      %v1127 = vmax.f32 %v709, 0.0
      %v1128 = vmax.f32 %v714, 0.0
      %v1129 = vmax.f32 %v719, 0.0
      %v1130 = vmax.f32 %v724, 0.0
      %v1131 = vmax.f32 %v729, 0.0
      %v1132 = vmax.f32 %v734, 0.0
      %v1133 = vmax.f32 %v739, 0.0
      %v1134 = vmax.f32 %v744, 0.0
      %v1135 = vmax.f32 %v749, 0.0
      %v1136 = vmax.f32 %v754, 0.0
      %v1137 = vmax.f32 %v759, 0.0
      %v1138 = vmax.f32 %v764, 0.0
      %v1139 = vmax.f32 %v769, 0.0
      %v1140 = vmax.f32 %v774, 0.0
      %v1141 = vmax.f32 %v779, 0.0
      %v1142 = vmax.f32 %v784, 0.0
      %v1143 = vmax.f32 %v789, 0.0
      %v1144 = vmax.f32 %v794, 0.0
      %v1145 = vmax.f32 %v799, 0.0
      %v1146 = vmax.f32 %v804, 0.0
      %v1147 = vmax.f32 %v809, 0.0
      %v1148 = vmax.f32 %v814, 0.0
      %v1149 = vmax.f32 %v819, 0.0
      %v1150 = vmax.f32 %v824, 0.0
      %v1151 = vmax.f32 %v829, 0.0
      %v1152 = vmax.f32 %v834, 0.0
      %v1153 = vmax.f32 %v839, 0.0
      %v1154 = vmax.f32 %v844, 0.0
      %v1155 = vmax.f32 %v849, 0.0
      %v1156 = vmax.f32 %v854, 0.0
      %v1157 = vmax.f32 %v859, 0.0
      %v1158 = vmax.f32 %v864, 0.0
      %v1159 = vmax.f32 %v869, 0.0
      %v1160 = vmax.f32 %v874, 0.0
      %v1161 = vmax.f32 %v879, 0.0
      %v1162 = vmax.f32 %v884, 0.0
      %v1163 = vmax.f32 %v889, 0.0
      %v1164 = vmax.f32 %v894, 0.0
      %v1165 = vmax.f32 %v899, 0.0
      %v1166 = vmax.f32 %v904, 0.0
      %v1167 = vmax.f32 %v909, 0.0
      %v1168 = vmax.f32 %v914, 0.0
      %v1169 = vmax.f32 %v919, 0.0
      %v1170 = vmax.f32 %v924, 0.0
      %v1171 = vmax.f32 %v929, 0.0
      %v1172 = vmax.f32 %v934, 0.0
      %v1173 = vmax.f32 %v939, 0.0
      %v1174 = vmax.f32 %v944, 0.0
      %v1175 = vmax.f32 %v949, 0.0
      %v1176 = vmax.f32 %v954, 0.0
      %v1177 = vmax.f32 %v959, 0.0
      %v1178 = vmax.f32 %v964, 0.0
      %v1179 = vmax.f32 %v969, 0.0
      %v1180 = vmax.f32 %v974, 0.0
      %v1181 = vmax.f32 %v979, 0.0
      %v1182 = vmax.f32 %v984, 0.0
      %v1183 = vmax.f32 %v989, 0.0
      %v1184 = vmax.f32 %v994, 0.0
      %v1185 = vmax.f32 %v999, 0.0
      %v1186 = vmax.f32 %v1004, 0.0
      %v1187 = vmax.f32 %v1009, 0.0
      %v1188 = vmax.f32 %v1014, 0.0
      %v1189 = vmax.f32 %v1019, 0.0
      %v1190 = vmax.f32 %v1024, 0.0
      %v1191 = vmax.f32 %v1029, 0.0
      %v1192 = vmax.f32 %v1034, 0.0
      %v1193 = vmax.f32 %v1039, 0.0
      %v1194 = vmax.f32 %v1044, 0.0
      %v1195 = vmax.f32 %v1049, 0.0
      %v1196 = vmax.f32 %v1054, 0.0
      %v1197 = vmax.f32 %v1059, 0.0
      %v1198 = vmax.f32 %v1064, 0.0
      %v1199 = vmax.f32 %v1069, 0.0
      %v1200 = vmax.f32 %v1074, 0.0
      %v1201 = vmax.f32 %v1079, 0.0
      %v1202 = vmax.f32 %v1084, 0.0
      %v1203 = vmax.f32 %v1089, 0.0
      %v1204 = vmax.f32 %v1094, 0.0
      %v1205 = vmax.f32 %v1099, 0.0
      %v1206 = vmax.f32 %v1104, 0.0
      %v1207 = vmax.f32 %v1109, 0.0
      %vm1208 = vcmask 130048
      %1209 = vst.msk [vmem:[%s172] sm:$0xff] %vm1208, %v1112
      %1210 = vst.msk [vmem:[%s172 + $0x8] sm:$0xff] %vm1208, %v1113
      %1211 = vst.msk [vmem:[%s172 + $0x10] sm:$0xff] %vm1208, %v1114
      %1212 = vst.msk [vmem:[%s172 + $0x18] sm:$0xff] %vm1208, %v1115
      %1213 = vst.msk [vmem:[%s172 + $0x20] sm:$0xff] %vm1208, %v1116
      %1214 = vst.msk [vmem:[%s172 + $0x28] sm:$0xff] %vm1208, %v1117
      %1215 = vst.msk [vmem:[%s172 + $0x30] sm:$0xff] %vm1208, %v1118
      %1216 = vst.msk [vmem:[%s172 + $0x38] sm:$0xff] %vm1208, %v1119
      %1217 = vst.msk [vmem:[%s172 + $0x40] sm:$0xff] %vm1208, %v1120
      %1218 = vst.msk [vmem:[%s172 + $0x48] sm:$0xff] %vm1208, %v1121
      %1219 = vst.msk [vmem:[%s172 + $0x50] sm:$0xff] %vm1208, %v1122
      %1220 = vst.msk [vmem:[%s172 + $0x58] sm:$0xff] %vm1208, %v1123
      %1221 = vst.msk [vmem:[%s172 + $0x60] sm:$0xff] %vm1208, %v1124
      %1222 = vst.msk [vmem:[%s172 + $0x68] sm:$0xff] %vm1208, %v1125
      %1223 = vst.msk [vmem:[%s172 + $0x70] sm:$0xff] %vm1208, %v1126
      %1224 = vst.msk [vmem:[%s172 + $0x78] sm:$0xff] %vm1208, %v1127
      %1225 = vst.msk [vmem:[%s172 + $0x80] sm:$0xff] %vm1208, %v1128
      %1226 = vst.msk [vmem:[%s172 + $0x88] sm:$0xff] %vm1208, %v1129
      %1227 = vst.msk [vmem:[%s172 + $0x90] sm:$0xff] %vm1208, %v1130
      %1228 = vst.msk [vmem:[%s172 + $0x98] sm:$0xff] %vm1208, %v1131
      %1229 = vst.msk [vmem:[%s172 + $0xa0] sm:$0xff] %vm1208, %v1132
      %1230 = vst.msk [vmem:[%s172 + $0xa8] sm:$0xff] %vm1208, %v1133
      %1231 = vst.msk [vmem:[%s172 + $0xb0] sm:$0xff] %vm1208, %v1134
      %1232 = vst.msk [vmem:[%s172 + $0xb8] sm:$0xff] %vm1208, %v1135
      %1233 = vst.msk [vmem:[%s172 + $0xc0] sm:$0xff] %vm1208, %v1136
      %1234 = vst.msk [vmem:[%s172 + $0xc8] sm:$0xff] %vm1208, %v1137
      %1235 = vst.msk [vmem:[%s172 + $0xd0] sm:$0xff] %vm1208, %v1138
      %1236 = vst.msk [vmem:[%s172 + $0xd8] sm:$0xff] %vm1208, %v1139
      %1237 = vst.msk [vmem:[%s172 + $0xe0] sm:$0xff] %vm1208, %v1140
      %1238 = vst.msk [vmem:[%s172 + $0xe8] sm:$0xff] %vm1208, %v1141
      %1239 = vst.msk [vmem:[%s172 + $0xf0] sm:$0xff] %vm1208, %v1142
      %1240 = vst.msk [vmem:[%s172 + $0xf8] sm:$0xff] %vm1208, %v1143
      %1241 = vst.msk [vmem:[%s172 + $0x100] sm:$0xff] %vm1208, %v1144
      %1242 = vst.msk [vmem:[%s172 + $0x108] sm:$0xff] %vm1208, %v1145
      %1243 = vst.msk [vmem:[%s172 + $0x110] sm:$0xff] %vm1208, %v1146
      %1244 = vst.msk [vmem:[%s172 + $0x118] sm:$0xff] %vm1208, %v1147
      %1245 = vst.msk [vmem:[%s172 + $0x120] sm:$0xff] %vm1208, %v1148
      %1246 = vst.msk [vmem:[%s172 + $0x128] sm:$0xff] %vm1208, %v1149
      %1247 = vst.msk [vmem:[%s172 + $0x130] sm:$0xff] %vm1208, %v1150
      %1248 = vst.msk [vmem:[%s172 + $0x138] sm:$0xff] %vm1208, %v1151
      %1249 = vst.msk [vmem:[%s172 + $0x140] sm:$0xff] %vm1208, %v1152
      %1250 = vst.msk [vmem:[%s172 + $0x148] sm:$0xff] %vm1208, %v1153
      %1251 = vst.msk [vmem:[%s172 + $0x150] sm:$0xff] %vm1208, %v1154
      %1252 = vst.msk [vmem:[%s172 + $0x158] sm:$0xff] %vm1208, %v1155
      %1253 = vst.msk [vmem:[%s172 + $0x160] sm:$0xff] %vm1208, %v1156
      %1254 = vst.msk [vmem:[%s172 + $0x168] sm:$0xff] %vm1208, %v1157
      %1255 = vst.msk [vmem:[%s172 + $0x170] sm:$0xff] %vm1208, %v1158
      %1256 = vst.msk [vmem:[%s172 + $0x178] sm:$0xff] %vm1208, %v1159
      %1257 = vst.msk [vmem:[%s172 + $0x180] sm:$0xff] %vm1208, %v1160
      %1258 = vst.msk [vmem:[%s172 + $0x188] sm:$0xff] %vm1208, %v1161
      %1259 = vst.msk [vmem:[%s172 + $0x190] sm:$0xff] %vm1208, %v1162
      %1260 = vst.msk [vmem:[%s172 + $0x198] sm:$0xff] %vm1208, %v1163
      %1261 = vst.msk [vmem:[%s172 + $0x1a0] sm:$0xff] %vm1208, %v1164
      %1262 = vst.msk [vmem:[%s172 + $0x1a8] sm:$0xff] %vm1208, %v1165
      %1263 = vst.msk [vmem:[%s172 + $0x1b0] sm:$0xff] %vm1208, %v1166
      %1264 = vst.msk [vmem:[%s172 + $0x1b8] sm:$0xff] %vm1208, %v1167
      %1265 = vst.msk [vmem:[%s172 + $0x1c0] sm:$0xff] %vm1208, %v1168
      %1266 = vst.msk [vmem:[%s172 + $0x1c8] sm:$0xff] %vm1208, %v1169
      %1267 = vst.msk [vmem:[%s172 + $0x1d0] sm:$0xff] %vm1208, %v1170
      %1268 = vst.msk [vmem:[%s172 + $0x1d8] sm:$0xff] %vm1208, %v1171
      %1269 = vst.msk [vmem:[%s172 + $0x1e0] sm:$0xff] %vm1208, %v1172
      %1270 = vst.msk [vmem:[%s172 + $0x1e8] sm:$0xff] %vm1208, %v1173
      %1271 = vst.msk [vmem:[%s172 + $0x1f0] sm:$0xff] %vm1208, %v1174
      %1272 = vst.msk [vmem:[%s172 + $0x1f8] sm:$0xff] %vm1208, %v1175
      %1273 = vst.msk [vmem:[%s172 + $0x200] sm:$0xff] %vm1208, %v1176
      %1274 = vst.msk [vmem:[%s172 + $0x208] sm:$0xff] %vm1208, %v1177
      %1275 = vst.msk [vmem:[%s172 + $0x210] sm:$0xff] %vm1208, %v1178
      %1276 = vst.msk [vmem:[%s172 + $0x218] sm:$0xff] %vm1208, %v1179
      %1277 = vst.msk [vmem:[%s172 + $0x220] sm:$0xff] %vm1208, %v1180
      %1278 = vst.msk [vmem:[%s172 + $0x228] sm:$0xff] %vm1208, %v1181
      %1279 = vst.msk [vmem:[%s172 + $0x230] sm:$0xff] %vm1208, %v1182
      %1280 = vst.msk [vmem:[%s172 + $0x238] sm:$0xff] %vm1208, %v1183
      %1281 = vst.msk [vmem:[%s172 + $0x240] sm:$0xff] %vm1208, %v1184
      %1282 = vst.msk [vmem:[%s172 + $0x248] sm:$0xff] %vm1208, %v1185
      %1283 = vst.msk [vmem:[%s172 + $0x250] sm:$0xff] %vm1208, %v1186
      %1284 = vst.msk [vmem:[%s172 + $0x258] sm:$0xff] %vm1208, %v1187
      %1285 = vst.msk [vmem:[%s172 + $0x260] sm:$0xff] %vm1208, %v1188
      %1286 = vst.msk [vmem:[%s172 + $0x268] sm:$0xff] %vm1208, %v1189
      %1287 = vst.msk [vmem:[%s172 + $0x270] sm:$0xff] %vm1208, %v1190
      %1288 = vst.msk [vmem:[%s172 + $0x278] sm:$0xff] %vm1208, %v1191
      %1289 = vst.msk [vmem:[%s172 + $0x280] sm:$0xff] %vm1208, %v1192
      %1290 = vst.msk [vmem:[%s172 + $0x288] sm:$0xff] %vm1208, %v1193
      %1291 = vst.msk [vmem:[%s172 + $0x290] sm:$0xff] %vm1208, %v1194
      %1292 = vst.msk [vmem:[%s172 + $0x298] sm:$0xff] %vm1208, %v1195
      %1293 = vst.msk [vmem:[%s172 + $0x2a0] sm:$0xff] %vm1208, %v1196
      %1294 = vst.msk [vmem:[%s172 + $0x2a8] sm:$0xff] %vm1208, %v1197
      %1295 = vst.msk [vmem:[%s172 + $0x2b0] sm:$0xff] %vm1208, %v1198
      %1296 = vst.msk [vmem:[%s172 + $0x2b8] sm:$0xff] %vm1208, %v1199
      %1297 = vst.msk [vmem:[%s172 + $0x2c0] sm:$0xff] %vm1208, %v1200
      %1298 = vst.msk [vmem:[%s172 + $0x2c8] sm:$0xff] %vm1208, %v1201
      %1299 = vst.msk [vmem:[%s172 + $0x2d0] sm:$0xff] %vm1208, %v1202
      %1300 = vst.msk [vmem:[%s172 + $0x2d8] sm:$0xff] %vm1208, %v1203
      %1301 = vst.msk [vmem:[%s172 + $0x2e0] sm:$0xff] %vm1208, %v1204
      %1302 = vst.msk [vmem:[%s172 + $0x2e8] sm:$0xff] %vm1208, %v1205
      %1303 = vst.msk [vmem:[%s172 + $0x2f0] sm:$0xff] %vm1208, %v1206
      %1304 = vst.msk [vmem:[%s172 + $0x2f8] sm:$0xff] %vm1208, %v1207
      %s1305 = smul.u32 96, %s14
      %p1306 = scmp.lt.s32.totalorder %s1305, 191
      %s1307 = scalar_select %p1306, %s1305, 191
      %s1308 = smul.addr %s1307, 8
      %s1309 = scalar_lea.vmem %s3, %s1308
      // Predicated region
      $region33: #{tpu_custom_call.1} parent=31 // pred_check
        %p1310 = pneg %p100
      $region34: #{tpu_custom_call.1} parent=31 // pred_check_branch
        %1312 = sbr.rel (%p1310) target = $region36
      $region35: #{tpu_custom_call.1} parent=31 // pred_region
        %s1313 = smul.u32 96, %s14
      $region36: #{tpu_custom_call.1} parent=31 // pred_fallthru
        _
    $region32: #{tpu_custom_call.1} parent=5 // pred_fallthru
      _
    %p1314 = scmp.le.s32.totalorder 2, %s9
    // Predicated region
    $region37: #{tpu_custom_call.1} parent=5 // pred_check
      %p1315 = pneg %p1314
    $region38: #{tpu_custom_call.1} parent=5 // pred_check_branch
      %1317 = sbr.rel (%p1315) target = $region40
    $region39: #{tpu_custom_call.1} parent=5 // pred_region
      %s1318 = ssub.s32 %s9, 2
      // Predicated region
      $region41: #{tpu_custom_call.1} parent=39 // pred_check
        %p1319 = pneg %p106
      $region42: #{tpu_custom_call.1} parent=39 // pred_check_branch
        %1321 = sbr.rel (%p1319) target = $region44
      $region43: #{tpu_custom_call.1} parent=39 // pred_region
        %s1322 = smul.u32 96, %s15
        %p1323 = scmp.lt.s32.totalorder %s1322, 191
        %s1324 = scalar_select %p1323, %s1322, 191
        %s1325 = smul.addr %s1324, 8
        %s1326 = scalar_lea.vmem %s3, %s1325
      $region44: #{tpu_custom_call.1} parent=39 // pred_fallthru
        _
    $region40: #{tpu_custom_call.1} parent=5 // pred_fallthru
      _
  $region6: #{tpu_custom_call.1} parent=0 // loop_footer
    %s13 = sadd.s32 1, %s9
  $region7: #{tpu_custom_call.1} parent=0 // loop_footer_branch
    %8 = sbr.rel target = $region3
  $region8: #{tpu_custom_call.1} parent=0 // loop_exit
    _

</llo_original>
